<compile_context>
chip_gen: v5e
topology: v5e:2x2
jax: 0.10.0
libtpu: 0.0.40
codegen_flags: <defaults>
</compile_context>

<pallas_src>
import functools

import jax
import jax.numpy as jnp
from jax.experimental import pallas as pl
from jax.experimental.pallas import tpu as pltpu

_LANE = 128
_SUB_CAP = 256   # max rows per in-kernel sub-tile (bounds vreg live ranges)


def _round_up(x, m):
    return (x + m - 1) // m * m


def _cdiv(a, b):
    return -(-a // b)


def _mlp_kernel(x_ref, w1_ref, b1_ref, w2_ref, b2_ref,
                w3_ref, b3_ref, w4_ref, b4_ref, o_ref,
                *, sub, num_sub, out_channel):
    # One grid step handles a (tb = num_sub * sub)-row tile of the batch.
    # All four layers are run per sub-tile so h1/h2/h3 (bf16) stay in vregs
    # instead of spilling to VMEM, and independent chunks let the scheduler
    # overlap EUP tanh of one chunk with the next chunk's MXU pushes.
    def body(j, carry):
        row = pl.multiple_of(j * sub, 8)
        x = x_ref[pl.ds(row, sub), :].astype(jnp.bfloat16)
        h1 = jnp.tanh(
            jnp.dot(x, w1_ref[...], preferred_element_type=jnp.float32)
            + b1_ref[...]).astype(jnp.bfloat16)
        h2 = jnp.tanh(
            jnp.dot(h1, w2_ref[...], preferred_element_type=jnp.float32)
            + b2_ref[...]).astype(jnp.bfloat16)
        h3 = jnp.tanh(
            jnp.dot(h2, w3_ref[...], preferred_element_type=jnp.float32)
            + b3_ref[...]).astype(jnp.bfloat16)
        h4 = (jnp.dot(h3, w4_ref[...], preferred_element_type=jnp.float32)
              + b4_ref[...])
        # w4/b4 are padded to 128 lanes for the MXU; only the real columns are
        # written, so no padded-f32 output ever reaches HBM.
        o_ref[pl.ds(row, sub), :] = h4[:, :out_channel].astype(o_ref.dtype)
        return carry

    jax.lax.fori_loop(0, num_sub, body, None, unroll=True)


def _choose_tiling(b, block_b):
    """Pick (tb, sub, num_sub, b_pad) minimizing batch padding.

    * >=2 grid steps whenever b >= 16 (keeps both v7x TensorCores busy).
    * tb is num_sub sub-tiles of `sub` rows (sub a multiple of 8, <= _SUB_CAP).
    """
    num_steps = max(_cdiv(b, block_b), 2 if b >= 16 else 1)
    tb_raw = _cdiv(b, num_steps)
    num_sub = _cdiv(tb_raw, _SUB_CAP)
    sub = _round_up(_cdiv(tb_raw, num_sub), 8)
    tb = sub * num_sub
    b_pad = tb * num_steps
    return tb, sub, num_sub, b_pad


def redis_single_dnn_forward(x, params, *, block_b=1024):
    """Fused forward pass of RedisSingleDNN.

    x: [B, in_channel] (any float dtype; treated as X.float()).
    params: dict from init_params (bf16 weights [fan_in, fan_out], f32 biases
            [1, fan_out]; fc4 padded to 128 lanes for the MXU only).
    Returns: [B, out_channel] float32.
    """
    x = x.astype(jnp.float32)
    b, in_channel = x.shape
    out_channel = params["out_channel"]
    padded_out = params["w4"].shape[1]

    tb, sub, num_sub, b_pad = _choose_tiling(b, block_b)
    if b_pad != b:
        x = jnp.pad(x, ((0, b_pad - b), (0, 0)))

    weights_biases = (params["w1"], params["b1"], params["w2"], params["b2"],
                      params["w3"], params["b3"], params["w4"], params["b4"])

    def resident_spec(arr):
        # Whole array as one block, same block index every grid step ->
        # DMA'd once and kept VMEM-resident across the batch grid.
        return pl.BlockSpec(arr.shape, lambda i: (0, 0))

    d1 = params["w1"].shape[1]
    d2 = params["w2"].shape[1]
    d3 = params["w3"].shape[1]
    flops = 2 * b_pad * (in_channel * d1 + d1 * d2 + d2 * d3 + d3 * padded_out)
    transcendentals = b_pad * (d1 + d2 + d3)
    bytes_accessed = (
        b_pad * in_channel * 4                       # x (f32 in)
        + b_pad * out_channel * 4                    # real (unpadded) output
        + sum(int(a.size) * a.dtype.itemsize for a in weights_biases)
    )

    kernel = functools.partial(_mlp_kernel, sub=sub, num_sub=num_sub,
                               out_channel=out_channel)

    out = pl.pallas_call(
        kernel,
        out_shape=jax.ShapeDtypeStruct((b_pad, out_channel), jnp.float32),
        grid=(b_pad // tb,),
        in_specs=[pl.BlockSpec((tb, in_channel), lambda i: (i, 0))]
                 + [resident_spec(a) for a in weights_biases],
        out_specs=pl.BlockSpec((tb, out_channel), lambda i: (i, 0)),
        compiler_params=pltpu.CompilerParams(
            dimension_semantics=("parallel",)),
        cost_estimate=pl.CostEstimate(
            flops=flops,
            transcendentals=transcendentals,
            bytes_accessed=bytes_accessed),
    )(x, *weights_biases)

    return out if b_pad == b else out[:b]


def init_params(key, in_channel, out_channel):
    """Init mimicking PyTorch nn.Linear defaults (U[-1/sqrt(fan_in), 1/sqrt(fan_in)]).

    Weights are stored [fan_in, fan_out] in bf16; biases [1, fan_out] in f32.
    fc4 is zero-padded on the output axis up to a multiple of 128 lanes so the
    final matmul has a full MXU N; the kernel only stores the real columns.
    """
    dims = [
        (in_channel, 2 * in_channel),      # fc1
        (2 * in_channel, 4 * in_channel),  # fc2
        (4 * in_channel, 2 * in_channel),  # fc3
        (2 * in_channel, out_channel),     # fc4
    ]
    padded_out = _round_up(out_channel, _LANE)
    params = {"out_channel": out_channel}
    for i, (fan_in, fan_out) in enumerate(dims, start=1):
        key, kw, kb = jax.random.split(key, 3)
        bound = 1.0 / float(fan_in) ** 0.5
        w = jax.random.uniform(kw, (fan_in, fan_out), jnp.float32,
                               minval=-bound, maxval=bound)
        bias = jax.random.uniform(kb, (1, fan_out), jnp.float32,
                                  minval=-bound, maxval=bound)
        if i == 4 and fan_out != padded_out:
            w = jnp.pad(w, ((0, 0), (0, padded_out - fan_out)))
            bias = jnp.pad(bias, ((0, 0), (0, padded_out - fan_out)))
        params[f"w{i}"] = w.astype(jnp.bfloat16)
        params[f"b{i}"] = bias
    return params


def _reference_forward(x, params):
    """Pure-JAX reference replicating the kernel's precision choices."""
    def layer(h, w, bias):
        return jnp.dot(h.astype(jnp.bfloat16), w,
                       preferred_element_type=jnp.float32) + bias

    h = jnp.tanh(layer(x.astype(jnp.float32), params["w1"], params["b1"]))
    h = jnp.tanh(layer(h.astype(jnp.bfloat16), params["w2"], params["b2"]))
    h = jnp.tanh(layer(h.astype(jnp.bfloat16), params["w3"], params["b3"]))
    h = layer(h.astype(jnp.bfloat16), params["w4"], params["b4"])
    return h[:, :params["out_channel"]]


if __name__ == "__main__":
    key = jax.random.PRNGKey(0)
    k_params, k_x1, k_x2 = jax.random.split(key, 3)

    in_channel = 32
    out_channel = 16
    params = init_params(k_params, in_channel, out_channel)

    # Small batch: single grid step, single sub-tile.
    x_small = jax.random.normal(k_x1, (8, in_channel), jnp.float32)
    out_small = jax.block_until_ready(redis_single_dnn_forward(x_small, params))
    ref_small = _reference_forward(x_small, params)
    assert out_small.shape == (8, out_channel)
    assert jnp.allclose(out_small, ref_small, atol=2e-3, rtol=2e-3), \
        "small-batch mismatch vs JAX reference"

    # Ragged batch: exercises the 2-step batch grid, in-kernel sub-tiling,
    # pipelining, and the row-pad/slice path (520 -> 2 tiles of 272).
    x_big = jax.random.normal(k_x2, (520, in_channel), jnp.float32)
    out_big = jax.block_until_ready(redis_single_dnn_forward(x_big, params))
    ref_big = _reference_forward(x_big, params)
    assert out_big.shape == (520, out_channel)
    assert jnp.allclose(out_big, ref_big, atol=2e-3, rtol=2e-3), \
        "gridded-batch mismatch vs JAX reference"

    print("KERNEL_OK")
</pallas_src>

<mosaic_0001>
module attributes {stable_mosaic.version = 11 : i64} {
  func.func @_mlp_kernel(%arg0: i32, %arg1: memref<8x32xf32, #tpu.memory_space<vmem>>, %arg2: memref<32x64xbf16, #tpu.memory_space<vmem>>, %arg3: memref<1x64xf32, #tpu.memory_space<vmem>>, %arg4: memref<64x128xbf16, #tpu.memory_space<vmem>>, %arg5: memref<1x128xf32, #tpu.memory_space<vmem>>, %arg6: memref<128x64xbf16, #tpu.memory_space<vmem>>, %arg7: memref<1x64xf32, #tpu.memory_space<vmem>>, %arg8: memref<64x128xbf16, #tpu.memory_space<vmem>>, %arg9: memref<1x128xf32, #tpu.memory_space<vmem>>, %arg10: memref<8x16xf32, #tpu.memory_space<vmem>>) attributes {dimension_semantics = [#tpu.dimension_semantics<parallel>], iteration_bounds = array<i64: 1>, scalar_prefetch = 0 : i64, scratch_operands = 0 : i64, tpu.core_type = #tpu.core_type<tc>, window_params = [{transform_indices = @transform_0, window_bounds = array<i64: 8, 32>}, {pipeline_mode = #tpu.pipeline_mode<synchronous>, transform_indices = @transform_1, window_bounds = array<i64: 32, 64>}, {pipeline_mode = #tpu.pipeline_mode<synchronous>, transform_indices = @transform_2, window_bounds = array<i64: 1, 64>}, {pipeline_mode = #tpu.pipeline_mode<synchronous>, transform_indices = @transform_3, window_bounds = array<i64: 64, 128>}, {pipeline_mode = #tpu.pipeline_mode<synchronous>, transform_indices = @transform_4, window_bounds = array<i64: 1, 128>}, {pipeline_mode = #tpu.pipeline_mode<synchronous>, transform_indices = @transform_5, window_bounds = array<i64: 128, 64>}, {pipeline_mode = #tpu.pipeline_mode<synchronous>, transform_indices = @transform_6, window_bounds = array<i64: 1, 64>}, {pipeline_mode = #tpu.pipeline_mode<synchronous>, transform_indices = @transform_7, window_bounds = array<i64: 64, 128>}, {pipeline_mode = #tpu.pipeline_mode<synchronous>, transform_indices = @transform_8, window_bounds = array<i64: 1, 128>}, {transform_indices = @transform_9, window_bounds = array<i64: 8, 16>}]} {
    %c0_i32 = arith.constant 0 : i32
    %c8_i32 = arith.constant 8 : i32
    %0 = arith.muli %c0_i32, %c8_i32 : i32
    %1 = tpu.assume_multiple %0, 8 : i32
    %2 = arith.index_cast %1 : i32 to index
    %c0 = arith.constant 0 : index
    %3 = vector.load %arg1[%2, %c0] : memref<8x32xf32, #tpu.memory_space<vmem>>, vector<8x32xf32>
    %4 = arith.truncf %3 : vector<8x32xf32> to vector<8x32xbf16>
    %c0_0 = arith.constant 0 : index
    %c0_1 = arith.constant 0 : index
    %5 = vector.load %arg2[%c0_0, %c0_1] : memref<32x64xbf16, #tpu.memory_space<vmem>>, vector<32x64xbf16>
    %cst = arith.constant dense<0.000000e+00> : vector<8x64xf32>
    %6 = tpu.matmul %4, %5, %cst {dimension_numbers = #tpu.dot_dimension_numbers<[1], [0], [0], [1], [0, 0, 1, 1], [], []>} : vector<8x32xbf16>, vector<32x64xbf16>, vector<8x64xf32> -> vector<8x64xf32>
    %c0_2 = arith.constant 0 : index
    %c0_3 = arith.constant 0 : index
    %7 = vector.load %arg3[%c0_2, %c0_3] : memref<1x64xf32, #tpu.memory_space<vmem>>, vector<1x64xf32>
    %8 = vector.broadcast %7 : vector<1x64xf32> to vector<8x64xf32>
    %9 = arith.addf %6, %8 : vector<8x64xf32>
    %10 = math.tanh %9 : vector<8x64xf32>
    %11 = arith.truncf %10 : vector<8x64xf32> to vector<8x64xbf16>
    %c0_4 = arith.constant 0 : index
    %c0_5 = arith.constant 0 : index
    %12 = vector.load %arg4[%c0_4, %c0_5] : memref<64x128xbf16, #tpu.memory_space<vmem>>, vector<64x128xbf16>
    %cst_6 = arith.constant dense<0.000000e+00> : vector<8x128xf32>
    %13 = tpu.matmul %11, %12, %cst_6 {dimension_numbers = #tpu.dot_dimension_numbers<[1], [0], [0], [1], [0, 0, 1, 1], [], []>} : vector<8x64xbf16>, vector<64x128xbf16>, vector<8x128xf32> -> vector<8x128xf32>
    %c0_7 = arith.constant 0 : index
    %c0_8 = arith.constant 0 : index
    %14 = vector.load %arg5[%c0_7, %c0_8] : memref<1x128xf32, #tpu.memory_space<vmem>>, vector<1x128xf32>
    %15 = vector.broadcast %14 : vector<1x128xf32> to vector<8x128xf32>
    %16 = arith.addf %13, %15 : vector<8x128xf32>
    %17 = math.tanh %16 : vector<8x128xf32>
    %18 = arith.truncf %17 : vector<8x128xf32> to vector<8x128xbf16>
    %c0_9 = arith.constant 0 : index
    %c0_10 = arith.constant 0 : index
    %19 = vector.load %arg6[%c0_9, %c0_10] : memref<128x64xbf16, #tpu.memory_space<vmem>>, vector<128x64xbf16>
    %cst_11 = arith.constant dense<0.000000e+00> : vector<8x64xf32>
    %20 = tpu.matmul %18, %19, %cst_11 {dimension_numbers = #tpu.dot_dimension_numbers<[1], [0], [0], [1], [0, 0, 1, 1], [], []>} : vector<8x128xbf16>, vector<128x64xbf16>, vector<8x64xf32> -> vector<8x64xf32>
    %c0_12 = arith.constant 0 : index
    %c0_13 = arith.constant 0 : index
    %21 = vector.load %arg7[%c0_12, %c0_13] : memref<1x64xf32, #tpu.memory_space<vmem>>, vector<1x64xf32>
    %22 = vector.broadcast %21 : vector<1x64xf32> to vector<8x64xf32>
    %23 = arith.addf %20, %22 : vector<8x64xf32>
    %24 = math.tanh %23 : vector<8x64xf32>
    %25 = arith.truncf %24 : vector<8x64xf32> to vector<8x64xbf16>
    %c0_14 = arith.constant 0 : index
    %c0_15 = arith.constant 0 : index
    %26 = vector.load %arg8[%c0_14, %c0_15] : memref<64x128xbf16, #tpu.memory_space<vmem>>, vector<64x128xbf16>
    %cst_16 = arith.constant dense<0.000000e+00> : vector<8x128xf32>
    %27 = tpu.matmul %25, %26, %cst_16 {dimension_numbers = #tpu.dot_dimension_numbers<[1], [0], [0], [1], [0, 0, 1, 1], [], []>} : vector<8x64xbf16>, vector<64x128xbf16>, vector<8x128xf32> -> vector<8x128xf32>
    %c0_17 = arith.constant 0 : index
    %c0_18 = arith.constant 0 : index
    %28 = vector.load %arg9[%c0_17, %c0_18] : memref<1x128xf32, #tpu.memory_space<vmem>>, vector<1x128xf32>
    %29 = vector.broadcast %28 : vector<1x128xf32> to vector<8x128xf32>
    %30 = arith.addf %27, %29 : vector<8x128xf32>
    %31 = vector.extract_strided_slice %30 {offsets = [0, 0], sizes = [8, 16], strides = [1, 1]} : vector<8x128xf32> to vector<8x16xf32>
    %32 = arith.index_cast %1 : i32 to index
    %c0_19 = arith.constant 0 : index
    %33 = vector.load %arg10[%32, %c0_19] : memref<8x16xf32, #tpu.memory_space<vmem>>, vector<8x16xf32>
    tpu.vector_store %arg10[%32, %c0_19], %31 {strides = array<i32>} : memref<8x16xf32, #tpu.memory_space<vmem>>, vector<8x16xf32>,
    %c1_i32 = arith.constant 1 : i32
    return
  }
  func.func @transform_0(%arg0: i32) -> (i32, i32) {
    %c0_i32 = arith.constant 0 : i32
    %c0_i32_0 = arith.constant 0 : i32
    return %arg0, %c0_i32 : i32, i32
  }
  func.func @transform_1(%arg0: i32) -> (i32, i32) {
    %c0_i32 = arith.constant 0 : i32
    %c0_i32_0 = arith.constant 0 : i32
    %c0_i32_1 = arith.constant 0 : i32
    return %c0_i32, %c0_i32_0 : i32, i32
  }
  func.func @transform_2(%arg0: i32) -> (i32, i32) {
    %c0_i32 = arith.constant 0 : i32
    %c0_i32_0 = arith.constant 0 : i32
    %c0_i32_1 = arith.constant 0 : i32
    return %c0_i32, %c0_i32_0 : i32, i32
  }
  func.func @transform_3(%arg0: i32) -> (i32, i32) {
    %c0_i32 = arith.constant 0 : i32
    %c0_i32_0 = arith.constant 0 : i32
    %c0_i32_1 = arith.constant 0 : i32
    return %c0_i32, %c0_i32_0 : i32, i32
  }
  func.func @transform_4(%arg0: i32) -> (i32, i32) {
    %c0_i32 = arith.constant 0 : i32
    %c0_i32_0 = arith.constant 0 : i32
    %c0_i32_1 = arith.constant 0 : i32
    return %c0_i32, %c0_i32_0 : i32, i32
  }
  func.func @transform_5(%arg0: i32) -> (i32, i32) {
    %c0_i32 = arith.constant 0 : i32
    %c0_i32_0 = arith.constant 0 : i32
    %c0_i32_1 = arith.constant 0 : i32
    return %c0_i32, %c0_i32_0 : i32, i32
  }
  func.func @transform_6(%arg0: i32) -> (i32, i32) {
    %c0_i32 = arith.constant 0 : i32
    %c0_i32_0 = arith.constant 0 : i32
    %c0_i32_1 = arith.constant 0 : i32
    return %c0_i32, %c0_i32_0 : i32, i32
  }
  func.func @transform_7(%arg0: i32) -> (i32, i32) {
    %c0_i32 = arith.constant 0 : i32
    %c0_i32_0 = arith.constant 0 : i32
    %c0_i32_1 = arith.constant 0 : i32
    return %c0_i32, %c0_i32_0 : i32, i32
  }
  func.func @transform_8(%arg0: i32) -> (i32, i32) {
    %c0_i32 = arith.constant 0 : i32
    %c0_i32_0 = arith.constant 0 : i32
    %c0_i32_1 = arith.constant 0 : i32
    return %c0_i32, %c0_i32_0 : i32, i32
  }
  func.func @transform_9(%arg0: i32) -> (i32, i32) {
    %c0_i32 = arith.constant 0 : i32
    %c0_i32_0 = arith.constant 0 : i32
    return %arg0, %c0_i32 : i32, i32
  }
}

</mosaic_0001>

<llo_original>
// kernel: tpu_custom_call.1
$region0: #{tpu_custom_call.1}
  #allocation0 [shape = 'u32[]', space=smem, size = 0x4, offset = 0x4, fixed_abs, tag = 'smem constant byte address 0x4 - core index']
  #allocation1 [shape = 'u32[72,128]{1,0:T(1,128)}', space=vmem, size = 0x9000, scoped, tag = 'internal scratch']
  %s0 = inlined_call_operand.vmem [shape: f32[8,32], index: 0, kind: input, shape index: {}]
  %s1 = inlined_call_operand.vmem [shape: bf16[32,64], index: 1, kind: input, shape index: {}]
  %s2 = inlined_call_operand.vmem [shape: f32[1,64], index: 2, kind: input, shape index: {}]
  %s3 = inlined_call_operand.vmem [shape: bf16[64,128], index: 3, kind: input, shape index: {}]
  %s4 = inlined_call_operand.vmem [shape: f32[1,128], index: 4, kind: input, shape index: {}]
  %s5 = inlined_call_operand.vmem [shape: bf16[128,64], index: 5, kind: input, shape index: {}]
  %s6 = inlined_call_operand.vmem [shape: f32[1,64], index: 6, kind: input, shape index: {}]
  %s7 = inlined_call_operand.vmem [shape: bf16[64,128], index: 7, kind: input, shape index: {}]
  %s8 = inlined_call_operand.vmem [shape: f32[1,128], index: 8, kind: input, shape index: {}]
  %s9 = inlined_call_operand.hbm [shape: f32[8,16], index: 9, kind: output, shape index: {}]
  %s10 = sld [smem:[#allocation0]]
  $region46: #{tpu_custom_call.1} parent=0
    _
  %s12 = ssub.s32 1, %s10
  %s13 = scalar_select 0, %s12, %s10
  $region1: #{tpu_custom_call.1} parent=0
    #allocation2 [shape = 'u8[4096]{0}', space=vmem, size = 0x1000, scoped, tag = 'output window, operand 0, single buffered']
    #allocation3 [shape = 's32[1]{0}', space=sflag, size = 0x4, scoped, tag = 'scoped memory for tpu_custom_call.1']
    %14 = vsyncpa [#allocation3], 0
    // Predicated region
    $region2: #{tpu_custom_call.1} parent=1 // pred_check
      _
    $region3: #{tpu_custom_call.1} parent=1 // pred_check_branch
      %16 = sbr.rel (0) target = $region5
    $region4: #{tpu_custom_call.1} parent=1 // pred_region
      _
    $region5: #{tpu_custom_call.1} parent=1 // pred_fallthru
      _
    // Predicated region
    $region6: #{tpu_custom_call.1} parent=1 // pred_check
      _
    $region7: #{tpu_custom_call.1} parent=1 // pred_check_branch
      %18 = sbr.rel (0) target = $region9
    $region8: #{tpu_custom_call.1} parent=1 // pred_region
      _
    $region9: #{tpu_custom_call.1} parent=1 // pred_fallthru
      _
    // Predicated region
    $region10: #{tpu_custom_call.1} parent=1 // pred_check
      _
    $region11: #{tpu_custom_call.1} parent=1 // pred_check_branch
      %20 = sbr.rel (0) target = $region13
    $region12: #{tpu_custom_call.1} parent=1 // pred_region
      _
    $region13: #{tpu_custom_call.1} parent=1 // pred_fallthru
      _
    // Predicated region
    $region14: #{tpu_custom_call.1} parent=1 // pred_check
      _
    $region15: #{tpu_custom_call.1} parent=1 // pred_check_branch
      %22 = sbr.rel (0) target = $region17
    $region16: #{tpu_custom_call.1} parent=1 // pred_region
      _
    $region17: #{tpu_custom_call.1} parent=1 // pred_fallthru
      _
    // Predicated region
    $region18: #{tpu_custom_call.1} parent=1 // pred_check
      _
    $region19: #{tpu_custom_call.1} parent=1 // pred_check_branch
      %24 = sbr.rel (0) target = $region21
    $region20: #{tpu_custom_call.1} parent=1 // pred_region
      _
    $region21: #{tpu_custom_call.1} parent=1 // pred_fallthru
      _
    // Predicated region
    $region22: #{tpu_custom_call.1} parent=1 // pred_check
      _
    $region23: #{tpu_custom_call.1} parent=1 // pred_check_branch
      %26 = sbr.rel (0) target = $region25
    $region24: #{tpu_custom_call.1} parent=1 // pred_region
      _
    $region25: #{tpu_custom_call.1} parent=1 // pred_fallthru
      _
    // Predicated region
    $region26: #{tpu_custom_call.1} parent=1 // pred_check
      _
    $region27: #{tpu_custom_call.1} parent=1 // pred_check_branch
      %28 = sbr.rel (0) target = $region29
    $region28: #{tpu_custom_call.1} parent=1 // pred_region
      _
    $region29: #{tpu_custom_call.1} parent=1 // pred_fallthru
      _
    // Predicated region
    $region30: #{tpu_custom_call.1} parent=1 // pred_check
      _
    $region31: #{tpu_custom_call.1} parent=1 // pred_check_branch
      %30 = sbr.rel (0) target = $region33
    $region32: #{tpu_custom_call.1} parent=1 // pred_region
      _
    $region33: #{tpu_custom_call.1} parent=1 // pred_fallthru
      _
    // Predicated region
    $region34: #{tpu_custom_call.1} parent=1 // pred_check
      _
    $region35: #{tpu_custom_call.1} parent=1 // pred_check_branch
      %32 = sbr.rel (0) target = $region37
    $region36: #{tpu_custom_call.1} parent=1 // pred_region
      _
    $region37: #{tpu_custom_call.1} parent=1 // pred_fallthru
      _
    %v34 = vld [vmem:[%s0] sm:$0xff]
    %v35 = vpack.c.bf16 %v34, %v34
    %v36 = vld [vmem:[%s1] sm:$0xf]
    %v37 = vld [vmem:[%s1 + $0x4] sm:$0xf]
    %v38 = vld [vmem:[%s1 + $0x8] sm:$0xf]
    %v39 = vld [vmem:[%s1 + $0xc] sm:$0xf]
    %v40 = vld [vmem:[%s2] sm:$0x1]
    %v42 = vperm.slane %v40, 0
    %v48 = vunpack.c.l.b16 %v36
    %v49 = vunpack.c.l.b16 %v37
    %v50 = vunpack.c.l.b16 %v38
    %v51 = vunpack.c.l.b16 %v39
    %v52 = vpack.c.b16 %v49, %v48
    %v53 = vpack.c.b16 %v51, %v50
    %vm56 = vcmask 261120
    %v58 = vsel %vm56, %v35, 0
    %60 = vmatpush.bf16.msra.mxu0 0
    %61 = vmatpush.bf16.msra.mxu0 0
    %62 = vmatpush.bf16.msra.mxu0 0
    %63 = vmatpush.bf16.msra.mxu0 0
    %64 = vmatpush.bf16.msra.mxu0 0
    %65 = vmatpush.bf16.msra.mxu0 0
    %66 = vmatpush.bf16.msra.mxu0 %v53
    %67 = vmatpush.bf16.msra.mxu0 %v52
    %68 = vmatmul.bf16.gmra.mxu0 %v58
    %v69 = vpop.f32.mrf.mxu0
    %v70 = vadd.f32 %v42, %v69
    %v71 = vpop.f32.mrf.mxu0
    %72 = vdwg.mxu0
    %v73 = vtanh.pop %v70
    %v74 = vpack.c.bf16 %v73, %v73
    %v75 = vld [vmem:[%s3] sm:$0xf]
    %v76 = vld [vmem:[%s3 + $0x4] sm:$0xf]
    %v77 = vld [vmem:[%s3 + $0x8] sm:$0xf]
    %v78 = vld [vmem:[%s3 + $0xc] sm:$0xf]
    %v79 = vld [vmem:[%s3 + $0x10] sm:$0xf]
    %v80 = vld [vmem:[%s3 + $0x14] sm:$0xf]
    %v81 = vld [vmem:[%s3 + $0x18] sm:$0xf]
    %v82 = vld [vmem:[%s3 + $0x1c] sm:$0xf]
    %v83 = vld [vmem:[%s4] sm:$0x1]
    %v85 = vperm.slane %v83, 0
    %v95 = vunpack.c.l.b16 %v75
    %v96 = vunpack.c.l.b16 %v76
    %v97 = vunpack.c.l.b16 %v77
    %v98 = vunpack.c.l.b16 %v78
    %v99 = vunpack.c.l.b16 %v79
    %v100 = vunpack.c.l.b16 %v80
    %v101 = vunpack.c.l.b16 %v81
    %v102 = vunpack.c.l.b16 %v82
    %v103 = vpack.c.b16 %v96, %v95
    %v104 = vpack.c.b16 %v98, %v97
    %v105 = vpack.c.b16 %v100, %v99
    %v106 = vpack.c.b16 %v102, %v101
    %vm111 = vcmask 523264
    %v113 = vsel %vm111, %v74, 0
    %115 = vmatpush.bf16.msra.mxu0 0
    %116 = vmatpush.bf16.msra.mxu0 0
    %117 = vmatpush.bf16.msra.mxu0 0
    %118 = vmatpush.bf16.msra.mxu0 0
    %119 = vmatpush.bf16.msra.mxu0 %v106
    %120 = vmatpush.bf16.msra.mxu0 %v105
    %121 = vmatpush.bf16.msra.mxu0 %v104
    %122 = vmatpush.bf16.msra.mxu0 %v103
    %123 = vmatmul.bf16.gmra.mxu0 %v113
    %v124 = vpop.f32.mrf.mxu0
    %v125 = vadd.f32 %v85, %v124
    %v126 = vpop.f32.mrf.mxu0
    %127 = vdwg.mxu0
    %v128 = vtanh.pop %v125
    %v129 = vpack.c.bf16 %v128, %v128
    %v130 = vld [vmem:[%s5] sm:$0xf]
    %v131 = vld [vmem:[%s5 + $0x4] sm:$0xf]
    %v132 = vld [vmem:[%s5 + $0x8] sm:$0xf]
    %v133 = vld [vmem:[%s5 + $0xc] sm:$0xf]
    %v134 = vld [vmem:[%s5 + $0x10] sm:$0xf]
    %v135 = vld [vmem:[%s5 + $0x14] sm:$0xf]
    %v136 = vld [vmem:[%s5 + $0x18] sm:$0xf]
    %v137 = vld [vmem:[%s5 + $0x1c] sm:$0xf]
    %v138 = vld [vmem:[%s5 + $0x20] sm:$0xf]
    %v139 = vld [vmem:[%s5 + $0x24] sm:$0xf]
    %v140 = vld [vmem:[%s5 + $0x28] sm:$0xf]
    %v141 = vld [vmem:[%s5 + $0x2c] sm:$0xf]
    %v142 = vld [vmem:[%s5 + $0x30] sm:$0xf]
    %v143 = vld [vmem:[%s5 + $0x34] sm:$0xf]
    %v144 = vld [vmem:[%s5 + $0x38] sm:$0xf]
    %v145 = vld [vmem:[%s5 + $0x3c] sm:$0xf]
    %v146 = vld [vmem:[%s6] sm:$0x1]
    %v148 = vperm.slane %v146, 0
    %v166 = vunpack.c.l.b16 %v130
    %v167 = vunpack.c.l.b16 %v131
    %v168 = vunpack.c.l.b16 %v132
    %v169 = vunpack.c.l.b16 %v133
    %v170 = vunpack.c.l.b16 %v134
    %v171 = vunpack.c.l.b16 %v135
    %v172 = vunpack.c.l.b16 %v136
    %v173 = vunpack.c.l.b16 %v137
    %v174 = vunpack.c.l.b16 %v138
    %v175 = vunpack.c.l.b16 %v139
    %v176 = vunpack.c.l.b16 %v140
    %v177 = vunpack.c.l.b16 %v141
    %v178 = vunpack.c.l.b16 %v142
    %v179 = vunpack.c.l.b16 %v143
    %v180 = vunpack.c.l.b16 %v144
    %v181 = vunpack.c.l.b16 %v145
    %v182 = vpack.c.b16 %v167, %v166
    %v183 = vpack.c.b16 %v169, %v168
    %v184 = vpack.c.b16 %v171, %v170
    %v185 = vpack.c.b16 %v173, %v172
    %v186 = vpack.c.b16 %v175, %v174
    %v187 = vpack.c.b16 %v177, %v176
    %v188 = vpack.c.b16 %v179, %v178
    %v189 = vpack.c.b16 %v181, %v180
    %198 = vmatpush.bf16.msra.mxu0 %v189
    %199 = vmatpush.bf16.msra.mxu0 %v188
    %200 = vmatpush.bf16.msra.mxu0 %v187
    %201 = vmatpush.bf16.msra.mxu0 %v186
    %202 = vmatpush.bf16.msra.mxu0 %v185
    %203 = vmatpush.bf16.msra.mxu0 %v184
    %204 = vmatpush.bf16.msra.mxu0 %v183
    %205 = vmatpush.bf16.msra.mxu0 %v182
    %206 = vmatmul.bf16.gmra.mxu0 %v129
    %v207 = vpop.f32.mrf.mxu0
    %v208 = vadd.f32 %v148, %v207
    %v209 = vpop.f32.mrf.mxu0
    %210 = vdwg.mxu0
    %v211 = vtanh.pop %v208
    %v212 = vpack.c.bf16 %v211, %v211
    %v213 = vld [vmem:[%s7] sm:$0xf]
    %v214 = vld [vmem:[%s7 + $0x4] sm:$0xf]
    %v215 = vld [vmem:[%s7 + $0x8] sm:$0xf]
    %v216 = vld [vmem:[%s7 + $0xc] sm:$0xf]
    %v217 = vld [vmem:[%s7 + $0x10] sm:$0xf]
    %v218 = vld [vmem:[%s7 + $0x14] sm:$0xf]
    %v219 = vld [vmem:[%s7 + $0x18] sm:$0xf]
    %v220 = vld [vmem:[%s7 + $0x1c] sm:$0xf]
    %v221 = vld [vmem:[%s8] sm:$0x1]
    %v223 = vperm.slane %v221, 0
    %v233 = vunpack.c.l.b16 %v213
    %v234 = vunpack.c.l.b16 %v214
    %v235 = vunpack.c.l.b16 %v215
    %v236 = vunpack.c.l.b16 %v216
    %v237 = vunpack.c.l.b16 %v217
    %v238 = vunpack.c.l.b16 %v218
    %v239 = vunpack.c.l.b16 %v219
    %v240 = vunpack.c.l.b16 %v220
    %v241 = vpack.c.b16 %v234, %v233
    %v242 = vpack.c.b16 %v236, %v235
    %v243 = vpack.c.b16 %v238, %v237
    %v244 = vpack.c.b16 %v240, %v239
    %v250 = vsel %vm111, %v212, 0
    %252 = vmatpush.bf16.msra.mxu0 0
    %253 = vmatpush.bf16.msra.mxu0 0
    %254 = vmatpush.bf16.msra.mxu0 0
    %255 = vmatpush.bf16.msra.mxu0 0
    %256 = vmatpush.bf16.msra.mxu0 %v244
    %257 = vmatpush.bf16.msra.mxu0 %v243
    %258 = vmatpush.bf16.msra.mxu0 %v242
    %259 = vmatpush.bf16.msra.mxu0 %v241
    %260 = vmatmul.bf16.gmra.mxu0 %v250
    %v261 = vpop.f32.mrf.mxu0
    %v262 = vadd.f32 %v223, %v261
    %v263 = vpop.f32.mrf.mxu0
    %264 = vdwg.mxu0
    %vm265 = vcmask 130048
    %266 = vst.msk [vmem:[#allocation2] sm:$0xff] %vm265, %v262
    // Predicated region
    $region38: #{tpu_custom_call.1} parent=1 // pred_check
      _
    $region39: #{tpu_custom_call.1} parent=1 // pred_check_branch
      %268 = sbr.rel (0) target = $region41
    $region40: #{tpu_custom_call.1} parent=1 // pred_region
      %270 = vsyncadd [#allocation3], 0
      %s272 = sshll.u32 [#allocation2], 4
      %s273 = int_to_ptr.vmem [resolvable:$true] %s272
      %s274 = sshll.u32 %s9, 4
      %s275 = int_to_ptr.hbm [resolvable:$true] %s274
      %277 = dma.vmem_to_hbm [thread:$0]  %s273, 128, %s275, [#allocation3]
    $region41: #{tpu_custom_call.1} parent=1 // pred_fallthru
      _
    // Predicated region
    $region42: #{tpu_custom_call.1} parent=1 // pred_check
      _
    $region43: #{tpu_custom_call.1} parent=1 // pred_check_branch
      %279 = sbr.rel (0) target = $region45
    $region44: #{tpu_custom_call.1} parent=1 // pred_region
      %281 = dma.done [#allocation3], 128
    $region45: #{tpu_custom_call.1} parent=1 // pred_fallthru
      _
    %282 = vsyncpa [#allocation3], 1

</llo_original>
